<compile_context>
chip_gen: v7x
topology: tpu7x:2x2x1
jax: 0.10.0
libtpu: 0.0.40
codegen_flags: <defaults>
</compile_context>

<pallas_src>
import functools

import jax
import jax.numpy as jnp
from jax import lax
from jax.experimental import pallas as pl
from jax.experimental.pallas import tpu as pltpu


# Per pipeline buffer-pair (input tile + lane-padded output tile) VMEM budget in bytes.
# Double buffering => ~2x this total, comfortably under v5e's 16 MiB scoped default.
_BUFFER_BUDGET = 4 * 1024 * 1024


def _make_gem_sum_kernel(*, take_p_ref, int_p, p_const, eps, cols, tile_c,
                         needs_mask, multi_k):
    """Build a kernel computing per-row sums of clamp(x, eps) ** p over the col tile."""

    def _tile_sum(p_ref, x_ref):
        x = jnp.maximum(x_ref[...].astype(jnp.float32), eps)       # clamp(min=eps)
        if take_p_ref:
            xp = jnp.power(x, p_ref[0])                            # learned p: EUP exp/log
        elif int_p is not None:
            xp = x                                                 # static int p: pure VPU
            for _ in range(int_p - 1):
                xp = xp * x
        else:
            xp = jnp.power(x, p_const)                             # static non-integer p
        if needs_mask:
            # Partial col block: out-of-range lanes hold garbage -> zero them before sum.
            k = pl.program_id(1)
            lane = lax.broadcasted_iota(jnp.int32, xp.shape, 1)
            xp = jnp.where(lane < (cols - k * tile_c), xp, 0.0)
        return jnp.sum(xp, axis=-1, keepdims=True)                 # (tile_r, 1) partial sum

    if multi_k:
        def body(p_ref, x_ref, o_ref, acc_ref):
            k = pl.program_id(1)

            @pl.when(k == 0)
            def _():
                acc_ref[...] = jnp.zeros_like(acc_ref)

            acc_ref[...] += _tile_sum(p_ref, x_ref)

            @pl.when(k == pl.num_programs(1) - 1)
            def _():
                o_ref[...] = acc_ref[...]
    else:
        def body(p_ref, x_ref, o_ref):
            o_ref[...] = _tile_sum(p_ref, x_ref)

    if take_p_ref:
        return body
    if multi_k:
        def kernel(x_ref, o_ref, acc_ref):
            body(None, x_ref, o_ref, acc_ref)
    else:
        def kernel(x_ref, o_ref):
            body(None, x_ref, o_ref)
    return kernel


def gem_pool(x, p=3.0, eps=1e-6, *, max_cols_per_block=None):
    """GeM pooling. x: (N, C, H, W); p: static Python float or (1,)-shaped jax array.

    Returns (N, C, 1, 1) in x.dtype.
    """
    N, C, H, W = x.shape
    rows, cols = N * C, H * W
    x2 = x.reshape(rows, cols)        # no transpose: row tiles are contiguous HBM regions

    # ---- p handling: static Python float => guaranteed fast path, no host sync. ----
    static_p = isinstance(p, (int, float))
    p_arr = None
    if static_p:
        p_const = float(p)
        r = round(p_const)
        int_p = int(r) if (abs(p_const - r) < 1e-12 and 1 <= r <= 8) else None
    else:
        p_const, int_p = None, None
        p_arr = jnp.asarray(p, jnp.float32).reshape(1)   # traced/learned p -> SMEM scalar

    # ---- Tile selection. ----
    padded_cols = ((cols + 127) // 128) * 128            # VMEM lane padding of a full-cols block
    limit_c = max(128, ((_BUFFER_BUDGET // (8 * 4)) // 128) * 128)
    if max_cols_per_block is not None:                   # test / override hook
        limit_c = max(128, (int(max_cols_per_block) // 128) * 128)

    if cols <= limit_c:
        tile_c, tile_c_padded = cols, padded_cols        # single col block (common case)
    else:
        tile_c = tile_c_padded = limit_c                 # tile the reduction axis
    nc = pl.cdiv(cols, tile_c)
    multi_k = nc > 1
    needs_mask = multi_k and (cols % tile_c != 0)

    # Row tile: budget input tile + lane-padded (tile_r, 1) output tile per buffer, and
    # cap at ~rows/2 so v7x's two TensorCores both get steps on the "parallel" axis.
    budget_rows = max(8, (_BUFFER_BUDGET // (tile_c_padded * 4 + 512)) // 8 * 8)
    half_rows = ((pl.cdiv(rows, 2) + 7) // 8) * 8
    tile_r = max(8, min(budget_rows, half_rows))
    nr = pl.cdiv(rows, tile_r)

    kernel = _make_gem_sum_kernel(
        take_p_ref=not static_p, int_p=int_p, p_const=p_const, eps=float(eps),
        cols=cols, tile_c=tile_c, needs_mask=needs_mask, multi_k=multi_k)

    in_specs = [pl.BlockSpec((tile_r, tile_c), lambda i, k: (i, k))]
    args = [x2]
    if not static_p:
        in_specs = [pl.BlockSpec(memory_space=pltpu.SMEM)] + in_specs
        args = [p_arr] + args

    scratch_shapes = (pltpu.VMEM((tile_r, 1), jnp.float32),) if multi_k else ()

    sums = pl.pallas_call(
        kernel,
        out_shape=jax.ShapeDtypeStruct((rows, 1), jnp.float32),
        grid=(nr, nc),
        in_specs=in_specs,
        out_specs=pl.BlockSpec((tile_r, 1), lambda i, k: (i, 0)),
        scratch_shapes=scratch_shapes,
        compiler_params=pltpu.CompilerParams(
            dimension_semantics=("parallel", "arbitrary")),
    )(*args)

    # ---- Epilogue (hoisted out of the kernel; operates on rows*4 bytes only). ----
    m = sums.reshape(rows) * (1.0 / float(cols))          # mean over H*W
    if static_p:
        if int_p == 1:
            y = m
        elif int_p == 2:
            y = jnp.sqrt(m)
        elif int_p == 3:
            y = jnp.cbrt(m)                               # m > 0 (eps clamp), exact for GeM p=3
        elif int_p == 4:
            y = jnp.sqrt(jnp.sqrt(m))
        elif int_p is not None:
            y = jnp.power(m, 1.0 / int_p)
        else:
            y = jnp.power(m, 1.0 / p_const)
        return y.astype(x.dtype).reshape(N, C, 1, 1)
    y = jnp.power(m, 1.0 / p_arr[0])
    return y.astype(x.dtype).reshape(N, C, 1, 1)


def _reference(x, p, eps):
    xp = jnp.power(jnp.maximum(x, eps), p)
    return jnp.power(jnp.mean(xp, axis=(2, 3), keepdims=True), 1.0 / p)


if __name__ == "__main__":
    key = jax.random.PRNGKey(0)
    k1, k2, k3 = jax.random.split(key, 3)
    eps = 1e-6

    # Case 1: lane-aligned spatial (16x16 -> cols=256), static p=3.0 -> integer VPU fast path.
    x1 = jax.random.normal(k1, (2, 4, 16, 16), dtype=jnp.float32)
    y1 = gem_pool(x1, 3.0, eps=eps)
    jax.block_until_ready(y1)
    assert y1.shape == (2, 4, 1, 1)
    assert jnp.allclose(y1, _reference(x1, 3.0, eps), rtol=1e-4, atol=1e-5)

    # Case 2: canonical GeM spatial 7x7 (cols=49, not lane aligned) -- no HBM transpose.
    x2 = jax.random.normal(k2, (2, 4, 7, 7), dtype=jnp.float32)
    y2 = gem_pool(x2, 3.0, eps=eps)
    jax.block_until_ready(y2)
    assert y2.shape == (2, 4, 1, 1)
    assert jnp.allclose(y2, _reference(x2, 3.0, eps), rtol=1e-4, atol=1e-5)

    # Case 2b: learned (device-array) p -> SMEM scalar + general exp/log path, under jit.
    p_learn = jnp.ones((1,), jnp.float32) * 2.5
    y2b = jax.jit(gem_pool)(x2, p_learn)
    jax.block_until_ready(y2b)
    assert jnp.allclose(y2b, _reference(x2, 2.5, eps), rtol=1e-4, atol=1e-5)

    # Case 3: force the H*W reduction grid axis + partial col-block masking
    # (cols=144, tile_c=128 -> 2 "arbitrary" steps, last block 16 valid lanes).
    x3 = jax.random.normal(k3, (2, 4, 12, 12), dtype=jnp.float32)
    y3 = gem_pool(x3, 2.0, eps=eps, max_cols_per_block=128)
    jax.block_until_ready(y3)
    assert jnp.allclose(y3, _reference(x3, 2.0, eps), rtol=1e-4, atol=1e-5)

    print("KERNEL_OK")
</pallas_src>

<mosaic_0001>
module attributes {stable_mosaic.version = 11 : i64} {
  func.func @kernel(%arg0: i32, %arg1: i32, %arg2: memref<8x256xf32, #tpu.memory_space<vmem>>, %arg3: memref<8x1xf32, #tpu.memory_space<vmem>>) attributes {dimension_semantics = [#tpu.dimension_semantics<parallel>, #tpu.dimension_semantics<arbitrary>], iteration_bounds = array<i64: 1, 1>, scalar_prefetch = 0 : i64, scratch_operands = 0 : i64, tpu.core_type = #tpu.core_type<tc>, window_params = [{transform_indices = @transform_0, window_bounds = array<i64: 8, 256>}, {transform_indices = @transform_1, window_bounds = array<i64: 8, 1>}]} {
    %c0 = arith.constant 0 : index
    %c0_0 = arith.constant 0 : index
    %0 = vector.load %arg2[%c0, %c0_0] : memref<8x256xf32, #tpu.memory_space<vmem>>, vector<8x256xf32>
    %cst = arith.constant 9.99999997E-7 : f32
    %1 = vector.broadcast %cst : f32 to vector<8x256xf32>
    %2 = arith.maximumf %0, %1 : vector<8x256xf32>
    %3 = arith.mulf %2, %2 : vector<8x256xf32>
    %4 = arith.mulf %3, %2 : vector<8x256xf32>
    %cst_1 = arith.constant dense<0.000000e+00> : vector<8xf32>
    %5 = vector.multi_reduction <add>, %4, %cst_1 [1] : vector<8x256xf32> to vector<8xf32>
    %6 = vector.shape_cast %5 : vector<8xf32> to vector<8x1xf32>
    %c0_2 = arith.constant 0 : index
    %c0_3 = arith.constant 0 : index
    %7 = vector.load %arg3[%c0_2, %c0_3] : memref<8x1xf32, #tpu.memory_space<vmem>>, vector<8x1xf32>
    tpu.vector_store %arg3[%c0_2, %c0_3], %6 {strides = array<i32>} : memref<8x1xf32, #tpu.memory_space<vmem>>, vector<8x1xf32>,
    return
  }
  func.func @transform_0(%arg0: i32, %arg1: i32) -> (i32, i32) {
    %c0_i32 = arith.constant 0 : i32
    return %arg0, %arg1 : i32, i32
  }
  func.func @transform_1(%arg0: i32, %arg1: i32) -> (i32, i32) {
    %c0_i32 = arith.constant 0 : i32
    %c0_i32_0 = arith.constant 0 : i32
    return %arg0, %c0_i32 : i32, i32
  }
}

</mosaic_0001>

<llo_original>
// kernel: tpu_custom_call.1
$region0: #{tpu_custom_call.1}
  #allocation0 [shape = 'u32[]', space=smem, size = 0x4, offset = 0x4, fixed_abs, tag = 'smem constant byte address 0x4 - core index']
  #allocation1 [shape = 'u32[144,128]{1,0:T(1,128)}', space=vmem, size = 0x12000, scoped, tag = 'internal scratch']
  %s0 = inlined_call_operand.hbm [shape: f32[8,256], index: 0, kind: input, shape index: {}]
  %s1 = inlined_call_operand.vmem [shape: f32[8,1], index: 1, kind: output, shape index: {}]
  %s2 = sld [smem:[#allocation0]]
  $region18: #{tpu_custom_call.1} parent=0
    _
  %s4 = ssub.s32 1, %s2
  %s5 = scalar_select 0, %s4, %s2
  $region1: #{tpu_custom_call.1} parent=0
    #allocation2 [shape = 'u8[8192]{0}', space=vmem, size = 0x2000, scoped, tag = 'input window, operand 0, single buffered']
    #allocation3 [shape = 's32[1]{0}', space=sflag, size = 0x4, scoped, tag = 'scoped memory for tpu_custom_call.1']
    %6 = vsyncpa [#allocation3], 0
    // Predicated region
    $region2: #{tpu_custom_call.1} parent=1 // pred_check
      _
    $region3: #{tpu_custom_call.1} parent=1 // pred_check_branch
      %8 = sbr.rel (0) target = $region5
    $region4: #{tpu_custom_call.1} parent=1 // pred_region
      %s10 = ssub.s32 256, 256
      %11 = vsyncadd [#allocation3], %s10
      %s13 = sshll.u32 [#allocation2], 4
      %s14 = int_to_ptr.vmem [resolvable:$true] %s13
      %16 = dma.hbm_to_vmem [thread:$0]  %s0, 256, %s14, [#allocation3]
    $region5: #{tpu_custom_call.1} parent=1 // pred_fallthru
      _
    // Predicated region
    $region6: #{tpu_custom_call.1} parent=1 // pred_check
      _
    $region7: #{tpu_custom_call.1} parent=1 // pred_check_branch
      %18 = sbr.rel (0) target = $region9
    $region8: #{tpu_custom_call.1} parent=1 // pred_region
      %19 = dma.done [#allocation3], 256
    $region9: #{tpu_custom_call.1} parent=1 // pred_fallthru
      _
    %v20 = vld [vmem:[#allocation2] sm:$0xff]
    %v21 = vld [vmem:[#allocation2 + $0x8] sm:$0xff]
    %v22 = vmax.f32 %v20, 1e-06
    %v23 = vmax.f32 %v21, 1e-06
    %v24 = vmul.f32 %v22, %v22
    %v25 = vmul.f32 %v23, %v23
    %v26 = vmul.f32 %v24, %v22
    %v27 = vmul.f32 %v25, %v23
    %v28 = vadd.f32 %v26, %v27
    %29 = vadd.xlane.f32.xlu0 %v28
    %v30 = vpop.xlane.xlu0 %29
    %vm31 = vcmask 7168
    %32 = vst.msk [vmem:[%s1] sm:$0xff] %vm31, %v30
    // Predicated region
    $region10: #{tpu_custom_call.1} parent=1 // pred_check
      _
    $region11: #{tpu_custom_call.1} parent=1 // pred_check_branch
      %34 = sbr.rel (0) target = $region13
    $region12: #{tpu_custom_call.1} parent=1 // pred_region
      _
    $region13: #{tpu_custom_call.1} parent=1 // pred_fallthru
      _
    // Predicated region
    $region14: #{tpu_custom_call.1} parent=1 // pred_check
      _
    $region15: #{tpu_custom_call.1} parent=1 // pred_check_branch
      %36 = sbr.rel (0) target = $region17
    $region16: #{tpu_custom_call.1} parent=1 // pred_region
      _
    $region17: #{tpu_custom_call.1} parent=1 // pred_fallthru
      _
    %37 = vsyncpa [#allocation3], 1

</llo_original>
